<compile_context>
chip_gen: v7x
topology: tpu7x:2x2x1
jax: 0.10.0
libtpu: 0.0.40
codegen_flags: <defaults>
</compile_context>

<pallas_src>
from typing import Dict, List, Optional, Union

import jax
import jax.numpy as jnp
from jax.experimental import pallas as pl
from jax.experimental.pallas import tpu as pltpu

_LANES = 128
_TARGET_BLOCK_BYTES = 2 * 1024 * 1024   # ~2 MiB per pipelined block buffer
_FULL_BLOCK_BYTES = 8 * 1024 * 1024     # single-block (no-grid) budget, in+out
_SMALL_FIELD_BYTES = 1 * 1024 * 1024    # fields below this are fused into one call


def _round_up(value: int, multiple: int) -> int:
    return ((value + multiple - 1) // multiple) * multiple


def _sublane(dtype) -> int:
    # fp32/int32 -> 8, bf16/fp16 -> 16, int8/fp8 -> 32
    itemsize = jnp.dtype(dtype).itemsize
    return 8 * max(1, 4 // itemsize)


def _compute_dtype(dtype):
    dtype = jnp.dtype(dtype)
    if jnp.issubdtype(dtype, jnp.floating):
        return dtype
    # Integer / bool fields: torch promotes (int_tensor - python_float) to f32.
    return jnp.dtype(jnp.float32)


def _vmem_bytes(shape, dtype) -> int:
    """VMEM footprint of a whole array laid out with (sublane, 128) tiling."""
    dtype = jnp.dtype(dtype)
    if len(shape) == 0:
        lead, rows, cols = 1, 1, 1
    elif len(shape) == 1:
        lead, rows, cols = 1, 1, shape[0]
    else:
        rows, cols = shape[-2], shape[-1]
        lead = 1
        for d in shape[:-2]:
            lead *= d
    return (lead
            * _round_up(max(rows, 1), _sublane(dtype))
            * _round_up(max(cols, 1), _LANES)
            * dtype.itemsize)


def _make_affine_kernel(mean: float, std: float, inverse: bool, compute_dtype):
    """Kernel closure with mean/std baked in as constants (no scalar operands)."""
    mean = float(mean)
    std = float(std)

    def kernel(x_ref, o_ref):
        x = x_ref[...].astype(compute_dtype)
        if inverse:
            y = x * std + mean              # unnormalize
        else:
            y = (x - mean) / std            # normalize (keeps torch std==0 pattern)
        o_ref[...] = y.astype(o_ref.dtype)

    return kernel


def _make_fused_kernel(consts, inverse: bool, compute_dtypes):
    """One kernel that applies a per-field affine to several (small) fields."""
    n = len(consts)

    def kernel(*refs):
        x_refs, o_refs = refs[:n], refs[n:]
        for x_ref, o_ref, (mean, std), cd in zip(x_refs, o_refs, consts, compute_dtypes):
            x = x_ref[...].astype(cd)
            y = x * std + mean if inverse else (x - mean) / std
            o_ref[...] = y.astype(o_ref.dtype)

    return kernel


def _affine_field(x: jax.Array, mean: float, std: float, inverse: bool,
                  block_rows: Optional[int] = None) -> jax.Array:
    """(x - mean)/std (or x*std + mean) for a single field via one pallas_call.

    Small fields: single full-array block (no grid). Large fields: 1-D
    "parallel" grid over row tiles of the collapsed-2D view; block last dim is
    the full last dim so no host-side padding/repacking is required.
    """
    orig_shape = x.shape
    cdtype = _compute_dtype(x.dtype)

    if x.size == 0:  # degenerate: nothing to do on-device
        xe = x.astype(cdtype)
        return (xe * std + mean) if inverse else ((xe - mean) / std)

    kernel = _make_affine_kernel(mean, std, inverse, cdtype)

    # Row-major collapse to 2D is a free bitcast-style reshape.
    if x.ndim == 0:
        x2 = x.reshape(1, 1)
    elif x.ndim == 1:
        x2 = x.reshape(1, x.shape[0])
    else:
        x2 = x.reshape(-1, x.shape[-1])
    rows, cols = x2.shape

    sub = max(_sublane(x2.dtype), _sublane(cdtype))
    in_bytes = _vmem_bytes((rows, cols), x2.dtype)
    out_bytes = _vmem_bytes((rows, cols), cdtype)

    if block_rows is None:
        if in_bytes + out_bytes <= _FULL_BLOCK_BYTES:
            block_rows = rows
        else:
            per_row = max(_vmem_bytes((sub, cols), x2.dtype),
                          _vmem_bytes((sub, cols), cdtype)) // sub
            block_rows = max(sub, (_TARGET_BLOCK_BYTES // per_row) // sub * sub)
    block_rows = min(block_rows, rows)

    out_shape = jax.ShapeDtypeStruct((rows, cols), cdtype)

    if block_rows >= rows:
        out2 = pl.pallas_call(kernel, out_shape=out_shape)(x2)
    else:
        block_rows = max(sub, (block_rows // sub) * sub)
        grid = (pl.cdiv(rows, block_rows),)
        out2 = pl.pallas_call(
            kernel,
            out_shape=out_shape,
            grid=grid,
            in_specs=[pl.BlockSpec((block_rows, cols), lambda i: (i, 0))],
            out_specs=pl.BlockSpec((block_rows, cols), lambda i: (i, 0)),
            compiler_params=pltpu.CompilerParams(
                dimension_semantics=("parallel",)),
        )(x2)

    return out2.reshape(orig_shape)


def _fused_small_fields(arrays: List[jax.Array], consts, inverse: bool) -> List[jax.Array]:
    """One pallas_call handling several small fields (whole arrays in VMEM)."""
    cdtypes = [_compute_dtype(a.dtype) for a in arrays]
    views, shapes = [], []
    for a in arrays:
        shapes.append(a.shape)
        if a.ndim == 0:
            views.append(a.reshape(1, 1))
        elif a.ndim == 1:
            views.append(a.reshape(1, a.shape[0]))
        else:
            views.append(a)

    kernel = _make_fused_kernel(consts, inverse, cdtypes)
    out_shapes = tuple(jax.ShapeDtypeStruct(v.shape, cd)
                       for v, cd in zip(views, cdtypes))
    outs = pl.pallas_call(kernel, out_shape=out_shapes)(*views)
    if not isinstance(outs, (list, tuple)):
        outs = (outs,)
    return [o.reshape(s) for o, s in zip(outs, shapes)]


class NormalizationLayer:
    """JAX/Pallas port of trajcast NormalizationLayer forward semantics."""

    def __init__(
        self,
        input_fields: Optional[Union[str, List[str]]] = "node_features",
        output_fields: Optional[Union[str, List[str]]] = "node_features",
        means: Optional[Union[float, Dict[str, float]]] = 1.0,
        stds: Optional[Union[float, Dict[str, float]]] = 0.0,
        inverse: Optional[bool] = False,
    ):
        # TODO(synk): irreps bookkeeping (_init_irreps / GraphModuleIrreps) is
        # pure metadata with no compute and is not ported.
        output_fields = input_fields if not output_fields else output_fields
        if isinstance(input_fields, list):
            if not isinstance(output_fields, list):
                raise TypeError("Input and output fields should be of the same type!")
            if not len(input_fields) == len(output_fields):
                raise IndexError("We need as many output_fields as input_fields.")
            self.input_fields = input_fields
            self.output_fields = output_fields
        else:
            if not isinstance(output_fields, str):
                raise TypeError("Input and output fields should be of the same type!")
            self.input_fields = [input_fields]
            self.output_fields = [output_fields]

        stds = stds if not isinstance(stds, float) else {self.input_fields[0]: stds}
        means = means if not isinstance(means, float) else {self.input_fields[0]: means}
        if not (set(means.keys()).issubset(self.input_fields)
                and set(stds.keys()).issubset(self.input_fields)):
            raise KeyError("Keys in means and stds should correspond to those in input_fields!")
        self.means = means
        self.stds = stds
        self.inverse = inverse

    def __call__(self, data: Dict[str, jax.Array]) -> Dict[str, jax.Array]:
        data = dict(data)  # shallow copy, like mutating the AtomicGraph dict

        present = [(c, f) for c, f in enumerate(self.input_fields) if f in data]
        if not present:
            return data

        # If an earlier output field feeds a later input field, the original
        # sequential mutation is observable -> process strictly field-by-field.
        hazard = any(of in self.input_fields[j + 1:]
                     for j, of in enumerate(self.output_fields))
        if hazard:
            for c, f in present:
                data[self.output_fields[c]] = _affine_field(
                    data[f], self.means[f], self.stds[f], self.inverse)
            return data

        # Fast path: fuse all small fields into one pallas_call; large or
        # degenerate fields each get their own (possibly tiled) call.
        fused, singles, budget = [], [], 0
        for c, f in present:
            a = data[f]
            cost = _vmem_bytes(a.shape, a.dtype) + _vmem_bytes(a.shape, _compute_dtype(a.dtype))
            if (a.size > 0 and cost <= _SMALL_FIELD_BYTES
                    and budget + cost <= _FULL_BLOCK_BYTES):
                fused.append((c, f))
                budget += cost
            else:
                singles.append((c, f))

        if len(fused) >= 2:
            arrays = [data[f] for _, f in fused]
            consts = [(float(self.means[f]), float(self.stds[f])) for _, f in fused]
            outs = _fused_small_fields(arrays, consts, self.inverse)
            for (c, f), o in zip(fused, outs):
                data[self.output_fields[c]] = o
        else:
            singles = fused + singles

        for c, f in singles:
            data[self.output_fields[c]] = _affine_field(
                data[f], self.means[f], self.stds[f], self.inverse)
        return data


if __name__ == "__main__":
    key = jax.random.PRNGKey(0)
    k1, k2, k3, k4 = jax.random.split(key, 4)

    # Small, forward-implied shapes: per-node / per-edge feature tensors.
    node_features = jax.random.normal(k1, (64, 32), dtype=jnp.float32)
    edge_features = jax.random.normal(k2, (128, 16), dtype=jnp.float32)
    displacements = jax.random.normal(k3, (64, 3), dtype=jnp.float32)   # non-128 last dim
    atom_types = jax.random.randint(k4, (64,), 0, 5, dtype=jnp.int32)   # int -> f32 promotion

    data = {
        "node_features": node_features,
        "edge_features": edge_features,
        "displacements": displacements,
        "atom_types": atom_types,
    }
    fields = ["node_features", "edge_features", "displacements", "atom_types"]
    means = {"node_features": 0.5, "edge_features": -0.25, "displacements": 0.1,
             "atom_types": 2.0}
    stds = {"node_features": 2.0, "edge_features": 1.5, "displacements": 0.7,
            "atom_types": 1.25}

    # Forward (normalize) pass: all fields are small -> one fused pallas_call.
    layer = NormalizationLayer(input_fields=fields, output_fields=fields,
                               means=means, stds=stds, inverse=False)
    out = layer(data)
    for f in fields:
        jax.block_until_ready(out[f])

    for f in fields:
        ref = (data[f].astype(jnp.float32) - means[f]) / stds[f]
        assert out[f].shape == data[f].shape, f
        assert jnp.allclose(out[f].astype(jnp.float32), ref, rtol=1e-5, atol=1e-5), f

    # Inverse (unnormalize) pass round-trips back to the input.
    inv_layer = NormalizationLayer(input_fields=fields, output_fields=fields,
                                   means=means, stds=stds, inverse=True)
    back = inv_layer(out)
    for f in fields:
        jax.block_until_ready(back[f])
        assert jnp.allclose(back[f].astype(jnp.float32),
                            data[f].astype(jnp.float32), rtol=1e-5, atol=1e-4), f

    # Also exercise the tiled "parallel"-grid path (with a partial last block):
    # 44 rows, forced tile of 8 rows -> grid of 6 blocks, last block masked.
    big = jax.random.normal(key, (44, 5), dtype=jnp.float32)
    tiled = _affine_field(big, mean=0.3, std=1.7, inverse=False, block_rows=8)
    jax.block_until_ready(tiled)
    assert jnp.allclose(tiled, (big - 0.3) / 1.7, rtol=1e-5, atol=1e-5)

    print("KERNEL_OK")
</pallas_src>

<mosaic_0001>
module attributes {stable_mosaic.version = 11 : i64} {
  func.func @kernel(%arg0: memref<64x32xf32, #tpu.memory_space<vmem>>, %arg1: memref<128x16xf32, #tpu.memory_space<vmem>>, %arg2: memref<64x3xf32, #tpu.memory_space<vmem>>, %arg3: memref<1x64xi32, #tpu.memory_space<vmem>>, %arg4: memref<64x32xf32, #tpu.memory_space<vmem>>, %arg5: memref<128x16xf32, #tpu.memory_space<vmem>>, %arg6: memref<64x3xf32, #tpu.memory_space<vmem>>, %arg7: memref<1x64xf32, #tpu.memory_space<vmem>>) attributes {dimension_semantics = [], scalar_prefetch = 0 : i64, scratch_operands = 0 : i64, tpu.core_type = #tpu.core_type<tc>} {
    %c0 = arith.constant 0 : index
    %c0_0 = arith.constant 0 : index
    %0 = vector.load %arg0[%c0, %c0_0] : memref<64x32xf32, #tpu.memory_space<vmem>>, vector<64x32xf32>
    %cst = arith.constant 5.000000e-01 : f32
    %1 = vector.broadcast %cst : f32 to vector<64x32xf32>
    %2 = arith.subf %0, %1 : vector<64x32xf32>
    %cst_1 = arith.constant 2.000000e+00 : f32
    %3 = vector.broadcast %cst_1 : f32 to vector<64x32xf32>
    %4 = arith.divf %2, %3 : vector<64x32xf32>
    %c0_2 = arith.constant 0 : index
    %c0_3 = arith.constant 0 : index
    %5 = vector.load %arg4[%c0_2, %c0_3] : memref<64x32xf32, #tpu.memory_space<vmem>>, vector<64x32xf32>
    tpu.vector_store %arg4[%c0_2, %c0_3], %4 {strides = array<i32>} : memref<64x32xf32, #tpu.memory_space<vmem>>, vector<64x32xf32>,
    %c0_4 = arith.constant 0 : index
    %c0_5 = arith.constant 0 : index
    %6 = vector.load %arg1[%c0_4, %c0_5] : memref<128x16xf32, #tpu.memory_space<vmem>>, vector<128x16xf32>
    %cst_6 = arith.constant -2.500000e-01 : f32
    %7 = vector.broadcast %cst_6 : f32 to vector<128x16xf32>
    %8 = arith.subf %6, %7 : vector<128x16xf32>
    %cst_7 = arith.constant 1.500000e+00 : f32
    %9 = vector.broadcast %cst_7 : f32 to vector<128x16xf32>
    %10 = arith.divf %8, %9 : vector<128x16xf32>
    %c0_8 = arith.constant 0 : index
    %c0_9 = arith.constant 0 : index
    %11 = vector.load %arg5[%c0_8, %c0_9] : memref<128x16xf32, #tpu.memory_space<vmem>>, vector<128x16xf32>
    tpu.vector_store %arg5[%c0_8, %c0_9], %10 {strides = array<i32>} : memref<128x16xf32, #tpu.memory_space<vmem>>, vector<128x16xf32>,
    %c0_10 = arith.constant 0 : index
    %c0_11 = arith.constant 0 : index
    %12 = vector.load %arg2[%c0_10, %c0_11] : memref<64x3xf32, #tpu.memory_space<vmem>>, vector<64x3xf32>
    %cst_12 = arith.constant 1.000000e-01 : f32
    %13 = vector.broadcast %cst_12 : f32 to vector<64x3xf32>
    %14 = arith.subf %12, %13 : vector<64x3xf32>
    %cst_13 = arith.constant 0.699999988 : f32
    %15 = vector.broadcast %cst_13 : f32 to vector<64x3xf32>
    %16 = arith.divf %14, %15 : vector<64x3xf32>
    %c0_14 = arith.constant 0 : index
    %c0_15 = arith.constant 0 : index
    %17 = vector.load %arg6[%c0_14, %c0_15] : memref<64x3xf32, #tpu.memory_space<vmem>>, vector<64x3xf32>
    tpu.vector_store %arg6[%c0_14, %c0_15], %16 {strides = array<i32>} : memref<64x3xf32, #tpu.memory_space<vmem>>, vector<64x3xf32>,
    %c0_16 = arith.constant 0 : index
    %c0_17 = arith.constant 0 : index
    %18 = vector.load %arg3[%c0_16, %c0_17] : memref<1x64xi32, #tpu.memory_space<vmem>>, vector<1x64xi32>
    %19 = arith.sitofp %18 : vector<1x64xi32> to vector<1x64xf32>
    %cst_18 = arith.constant 2.000000e+00 : f32
    %20 = vector.broadcast %cst_18 : f32 to vector<1x64xf32>
    %21 = arith.subf %19, %20 : vector<1x64xf32>
    %cst_19 = arith.constant 1.250000e+00 : f32
    %22 = vector.broadcast %cst_19 : f32 to vector<1x64xf32>
    %23 = arith.divf %21, %22 : vector<1x64xf32>
    %c0_20 = arith.constant 0 : index
    %c0_21 = arith.constant 0 : index
    %24 = vector.load %arg7[%c0_20, %c0_21] : memref<1x64xf32, #tpu.memory_space<vmem>>, vector<1x64xf32>
    tpu.vector_store %arg7[%c0_20, %c0_21], %23 {strides = array<i32>} : memref<1x64xf32, #tpu.memory_space<vmem>>, vector<1x64xf32>,
    return
  }
}

</mosaic_0001>

<llo_original>
// kernel: tpu_custom_call.1
$region0: #{tpu_custom_call.1}
  #allocation0 [shape = 'u32[]', space=smem, size = 0x4, offset = 0x4, fixed_abs, tag = 'smem constant byte address 0x4 - core index']
  #allocation1 [shape = 'u32[144,128]{1,0:T(1,128)}', space=vmem, size = 0x12000, scoped, tag = 'internal scratch']
  %s0 = inlined_call_operand.vmem [shape: f32[64,32], index: 0, kind: input, shape index: {}]
  %s1 = inlined_call_operand.vmem [shape: f32[128,16], index: 1, kind: input, shape index: {}]
  %s2 = inlined_call_operand.vmem [shape: f32[64,3], index: 2, kind: input, shape index: {}]
  %s3 = inlined_call_operand.vmem [shape: s32[1,64], index: 3, kind: input, shape index: {}]
  %s4 = inlined_call_operand.vmem [shape: f32[64,32], index: 4, kind: output, shape index: {0}]
  %s5 = inlined_call_operand.vmem [shape: f32[128,16], index: 5, kind: output, shape index: {1}]
  %s6 = inlined_call_operand.vmem [shape: f32[64,3], index: 6, kind: output, shape index: {2}]
  %s7 = inlined_call_operand.hbm [shape: f32[1,64], index: 7, kind: output, shape index: {3}]
  %8 = xla_tuple %s4, %s5, %s6, %s7
  %s9 = sld [smem:[#allocation0]]
  $region50: #{tpu_custom_call.1} parent=0
    _
  %s11 = ssub.s32 1, %s9
  %s12 = scalar_select 0, %s11, %s9
  $region1: #{tpu_custom_call.1} parent=0
    #allocation2 [shape = 'u8[512]{0}', space=vmem, size = 0x400, scoped, tag = 'output window, operand 3, single buffered']
    #allocation3 [shape = 's32[1]{0}', space=sflag, size = 0x4, scoped, tag = 'scoped memory for tpu_custom_call.1']
    %13 = vsyncpa [#allocation3], 0
    // Predicated region
    $region2: #{tpu_custom_call.1} parent=1 // pred_check
      _
    $region3: #{tpu_custom_call.1} parent=1 // pred_check_branch
      %15 = sbr.rel (0) target = $region5
    $region4: #{tpu_custom_call.1} parent=1 // pred_region
      _
    $region5: #{tpu_custom_call.1} parent=1 // pred_fallthru
      _
    // Predicated region
    $region6: #{tpu_custom_call.1} parent=1 // pred_check
      _
    $region7: #{tpu_custom_call.1} parent=1 // pred_check_branch
      %17 = sbr.rel (0) target = $region9
    $region8: #{tpu_custom_call.1} parent=1 // pred_region
      _
    $region9: #{tpu_custom_call.1} parent=1 // pred_fallthru
      _
    // Predicated region
    $region10: #{tpu_custom_call.1} parent=1 // pred_check
      _
    $region11: #{tpu_custom_call.1} parent=1 // pred_check_branch
      %19 = sbr.rel (0) target = $region13
    $region12: #{tpu_custom_call.1} parent=1 // pred_region
      _
    $region13: #{tpu_custom_call.1} parent=1 // pred_fallthru
      _
    // Predicated region
    $region14: #{tpu_custom_call.1} parent=1 // pred_check
      _
    $region15: #{tpu_custom_call.1} parent=1 // pred_check_branch
      %21 = sbr.rel (0) target = $region17
    $region16: #{tpu_custom_call.1} parent=1 // pred_region
      _
    $region17: #{tpu_custom_call.1} parent=1 // pred_fallthru
      _
    %v22 = vld [vmem:[%s0] sm:$0xff]
    %v23 = vld [vmem:[%s0 + $0x8] sm:$0xff]
    %v24 = vld [vmem:[%s0 + $0x10] sm:$0xff]
    %v25 = vld [vmem:[%s0 + $0x18] sm:$0xff]
    %v26 = vld [vmem:[%s0 + $0x20] sm:$0xff]
    %v27 = vld [vmem:[%s0 + $0x28] sm:$0xff]
    %v28 = vld [vmem:[%s0 + $0x30] sm:$0xff]
    %v29 = vld [vmem:[%s0 + $0x38] sm:$0xff]
    %v30 = vsub.f32 %v22, 0.5
    %v31 = vsub.f32 %v23, 0.5
    %v32 = vsub.f32 %v24, 0.5
    %v33 = vsub.f32 %v25, 0.5
    %v34 = vsub.f32 %v26, 0.5
    %v35 = vsub.f32 %v27, 0.5
    %v36 = vsub.f32 %v28, 0.5
    %v37 = vsub.f32 %v29, 0.5
    %v38 = vrcp.pop 2.0
    %v39 = vmul.f32 %v30, %v38
    %v40 = vmul.f32 %v31, %v38
    %v41 = vmul.f32 %v32, %v38
    %v42 = vmul.f32 %v33, %v38
    %v43 = vmul.f32 %v34, %v38
    %v44 = vmul.f32 %v35, %v38
    %v45 = vmul.f32 %v36, %v38
    %v46 = vmul.f32 %v37, %v38
    %vm47 = vcmask 261120
    %48 = vst.msk [vmem:[%s4] sm:$0xff] %vm47, %v39
    %49 = vst.msk [vmem:[%s4 + $0x8] sm:$0xff] %vm47, %v40
    %50 = vst.msk [vmem:[%s4 + $0x10] sm:$0xff] %vm47, %v41
    %51 = vst.msk [vmem:[%s4 + $0x18] sm:$0xff] %vm47, %v42
    %52 = vst.msk [vmem:[%s4 + $0x20] sm:$0xff] %vm47, %v43
    %53 = vst.msk [vmem:[%s4 + $0x28] sm:$0xff] %vm47, %v44
    %54 = vst.msk [vmem:[%s4 + $0x30] sm:$0xff] %vm47, %v45
    %55 = vst.msk [vmem:[%s4 + $0x38] sm:$0xff] %vm47, %v46
    %v56 = vld [vmem:[%s1] sm:$0xff]
    %v57 = vld [vmem:[%s1 + $0x8] sm:$0xff]
    %v58 = vld [vmem:[%s1 + $0x10] sm:$0xff]
    %v59 = vld [vmem:[%s1 + $0x18] sm:$0xff]
    %v60 = vld [vmem:[%s1 + $0x20] sm:$0xff]
    %v61 = vld [vmem:[%s1 + $0x28] sm:$0xff]
    %v62 = vld [vmem:[%s1 + $0x30] sm:$0xff]
    %v63 = vld [vmem:[%s1 + $0x38] sm:$0xff]
    %v64 = vld [vmem:[%s1 + $0x40] sm:$0xff]
    %v65 = vld [vmem:[%s1 + $0x48] sm:$0xff]
    %v66 = vld [vmem:[%s1 + $0x50] sm:$0xff]
    %v67 = vld [vmem:[%s1 + $0x58] sm:$0xff]
    %v68 = vld [vmem:[%s1 + $0x60] sm:$0xff]
    %v69 = vld [vmem:[%s1 + $0x68] sm:$0xff]
    %v70 = vld [vmem:[%s1 + $0x70] sm:$0xff]
    %v71 = vld [vmem:[%s1 + $0x78] sm:$0xff]
    %v72 = vsub.f32 %v56, -0.25
    %v73 = vsub.f32 %v57, -0.25
    %v74 = vsub.f32 %v58, -0.25
    %v75 = vsub.f32 %v59, -0.25
    %v76 = vsub.f32 %v60, -0.25
    %v77 = vsub.f32 %v61, -0.25
    %v78 = vsub.f32 %v62, -0.25
    %v79 = vsub.f32 %v63, -0.25
    %v80 = vsub.f32 %v64, -0.25
    %v81 = vsub.f32 %v65, -0.25
    %v82 = vsub.f32 %v66, -0.25
    %v83 = vsub.f32 %v67, -0.25
    %v84 = vsub.f32 %v68, -0.25
    %v85 = vsub.f32 %v69, -0.25
    %v86 = vsub.f32 %v70, -0.25
    %v87 = vsub.f32 %v71, -0.25
    %v88 = vrcp.pop 1.5
    %v89 = vmul.f32 %v72, %v88
    %v90 = vmul.f32 %v73, %v88
    %v91 = vmul.f32 %v74, %v88
    %v92 = vmul.f32 %v75, %v88
    %v93 = vmul.f32 %v76, %v88
    %v94 = vmul.f32 %v77, %v88
    %v95 = vmul.f32 %v78, %v88
    %v96 = vmul.f32 %v79, %v88
    %v97 = vmul.f32 %v80, %v88
    %v98 = vmul.f32 %v81, %v88
    %v99 = vmul.f32 %v82, %v88
    %v100 = vmul.f32 %v83, %v88
    %v101 = vmul.f32 %v84, %v88
    %v102 = vmul.f32 %v85, %v88
    %v103 = vmul.f32 %v86, %v88
    %v104 = vmul.f32 %v87, %v88
    %vm105 = vcmask 130048
    %106 = vst.msk [vmem:[%s5] sm:$0xff] %vm105, %v89
    %107 = vst.msk [vmem:[%s5 + $0x8] sm:$0xff] %vm105, %v90
    %108 = vst.msk [vmem:[%s5 + $0x10] sm:$0xff] %vm105, %v91
    %109 = vst.msk [vmem:[%s5 + $0x18] sm:$0xff] %vm105, %v92
    %110 = vst.msk [vmem:[%s5 + $0x20] sm:$0xff] %vm105, %v93
    %111 = vst.msk [vmem:[%s5 + $0x28] sm:$0xff] %vm105, %v94
    %112 = vst.msk [vmem:[%s5 + $0x30] sm:$0xff] %vm105, %v95
    %113 = vst.msk [vmem:[%s5 + $0x38] sm:$0xff] %vm105, %v96
    %114 = vst.msk [vmem:[%s5 + $0x40] sm:$0xff] %vm105, %v97
    %115 = vst.msk [vmem:[%s5 + $0x48] sm:$0xff] %vm105, %v98
    %116 = vst.msk [vmem:[%s5 + $0x50] sm:$0xff] %vm105, %v99
    %117 = vst.msk [vmem:[%s5 + $0x58] sm:$0xff] %vm105, %v100
    %118 = vst.msk [vmem:[%s5 + $0x60] sm:$0xff] %vm105, %v101
    %119 = vst.msk [vmem:[%s5 + $0x68] sm:$0xff] %vm105, %v102
    %120 = vst.msk [vmem:[%s5 + $0x70] sm:$0xff] %vm105, %v103
    %121 = vst.msk [vmem:[%s5 + $0x78] sm:$0xff] %vm105, %v104
    %v122 = vld [vmem:[%s2] sm:$0xff]
    %v123 = vld [vmem:[%s2 + $0x8] sm:$0xff]
    %v124 = vld [vmem:[%s2 + $0x10] sm:$0xff]
    %v125 = vld [vmem:[%s2 + $0x18] sm:$0xff]
    %v126 = vld [vmem:[%s2 + $0x20] sm:$0xff]
    %v127 = vld [vmem:[%s2 + $0x28] sm:$0xff]
    %v128 = vld [vmem:[%s2 + $0x30] sm:$0xff]
    %v129 = vld [vmem:[%s2 + $0x38] sm:$0xff]
    %v130 = vsub.f32 %v122, 0.1
    %v131 = vsub.f32 %v123, 0.1
    %v132 = vsub.f32 %v124, 0.1
    %v133 = vsub.f32 %v125, 0.1
    %v134 = vsub.f32 %v126, 0.1
    %v135 = vsub.f32 %v127, 0.1
    %v136 = vsub.f32 %v128, 0.1
    %v137 = vsub.f32 %v129, 0.1
    %v138 = vrcp.pop 0.7
    %v139 = vmul.f32 %v130, %v138
    %v140 = vmul.f32 %v131, %v138
    %v141 = vmul.f32 %v132, %v138
    %v142 = vmul.f32 %v133, %v138
    %v143 = vmul.f32 %v134, %v138
    %v144 = vmul.f32 %v135, %v138
    %v145 = vmul.f32 %v136, %v138
    %v146 = vmul.f32 %v137, %v138
    %vm147 = vcmask 23552
    %148 = vst.msk [vmem:[%s6] sm:$0xff] %vm147, %v139
    %149 = vst.msk [vmem:[%s6 + $0x8] sm:$0xff] %vm147, %v140
    %150 = vst.msk [vmem:[%s6 + $0x10] sm:$0xff] %vm147, %v141
    %151 = vst.msk [vmem:[%s6 + $0x18] sm:$0xff] %vm147, %v142
    %152 = vst.msk [vmem:[%s6 + $0x20] sm:$0xff] %vm147, %v143
    %153 = vst.msk [vmem:[%s6 + $0x28] sm:$0xff] %vm147, %v144
    %154 = vst.msk [vmem:[%s6 + $0x30] sm:$0xff] %vm147, %v145
    %155 = vst.msk [vmem:[%s6 + $0x38] sm:$0xff] %vm147, %v146
    %v156 = vld [vmem:[%s3] sm:$0x1]
    %v157 = vcvt.s32.f32 %v156
    %v158 = vsub.f32 %v157, 2.0
    %v159 = vrcp.pop 1.25
    %v160 = vmul.f32 %v158, %v159
    %vm161 = vcmask 516096
    %162 = vst.msk [vmem:[#allocation2] sm:$0x1] %vm161, %v160
    // Predicated region
    $region18: #{tpu_custom_call.1} parent=1 // pred_check
      _
    $region19: #{tpu_custom_call.1} parent=1 // pred_check_branch
      %164 = sbr.rel (0) target = $region21
    $region20: #{tpu_custom_call.1} parent=1 // pred_region
      _
    $region21: #{tpu_custom_call.1} parent=1 // pred_fallthru
      _
    // Predicated region
    $region22: #{tpu_custom_call.1} parent=1 // pred_check
      _
    $region23: #{tpu_custom_call.1} parent=1 // pred_check_branch
      %166 = sbr.rel (0) target = $region25
    $region24: #{tpu_custom_call.1} parent=1 // pred_region
      _
    $region25: #{tpu_custom_call.1} parent=1 // pred_fallthru
      _
    // Predicated region
    $region26: #{tpu_custom_call.1} parent=1 // pred_check
      _
    $region27: #{tpu_custom_call.1} parent=1 // pred_check_branch
      %168 = sbr.rel (0) target = $region29
    $region28: #{tpu_custom_call.1} parent=1 // pred_region
      _
    $region29: #{tpu_custom_call.1} parent=1 // pred_fallthru
      _
    // Predicated region
    $region30: #{tpu_custom_call.1} parent=1 // pred_check
      _
    $region31: #{tpu_custom_call.1} parent=1 // pred_check_branch
      %170 = sbr.rel (0) target = $region33
    $region32: #{tpu_custom_call.1} parent=1 // pred_region
      %s172 = ssub.s32 16, 16
      %173 = vsyncadd [#allocation3], %s172
      %s175 = sshll.u32 [#allocation2], 4
      %s176 = int_to_ptr.vmem [resolvable:$true] %s175
      %178 = dma.vmem_to_hbm [thread:$0]  %s176, 16, %s7, [#allocation3]
    $region33: #{tpu_custom_call.1} parent=1 // pred_fallthru
      _
    // Predicated region
    $region34: #{tpu_custom_call.1} parent=1 // pred_check
      _
    $region35: #{tpu_custom_call.1} parent=1 // pred_check_branch
      %180 = sbr.rel (0) target = $region37
    $region36: #{tpu_custom_call.1} parent=1 // pred_region
      _
    $region37: #{tpu_custom_call.1} parent=1 // pred_fallthru
      _
    // Predicated region
    $region38: #{tpu_custom_call.1} parent=1 // pred_check
      _
    $region39: #{tpu_custom_call.1} parent=1 // pred_check_branch
      %182 = sbr.rel (0) target = $region41
    $region40: #{tpu_custom_call.1} parent=1 // pred_region
      _
    $region41: #{tpu_custom_call.1} parent=1 // pred_fallthru
      _
    // Predicated region
    $region42: #{tpu_custom_call.1} parent=1 // pred_check
      _
    $region43: #{tpu_custom_call.1} parent=1 // pred_check_branch
      %184 = sbr.rel (0) target = $region45
    $region44: #{tpu_custom_call.1} parent=1 // pred_region
      _
    $region45: #{tpu_custom_call.1} parent=1 // pred_fallthru
      _
    // Predicated region
    $region46: #{tpu_custom_call.1} parent=1 // pred_check
      _
    $region47: #{tpu_custom_call.1} parent=1 // pred_check_branch
      %186 = sbr.rel (0) target = $region49
    $region48: #{tpu_custom_call.1} parent=1 // pred_region
      %187 = dma.done [#allocation3], 16
    $region49: #{tpu_custom_call.1} parent=1 // pred_fallthru
      _
    %188 = vsyncpa [#allocation3], 1

</llo_original>
